<compile_context>
chip_gen: v5e
topology: v5e:2x2
jax: 0.10.0
libtpu: 0.0.40
codegen_flags: <defaults>
</compile_context>

<pallas_src>
import functools

import jax
import jax.numpy as jnp
from jax import lax
from jax.experimental import pallas as pl
from jax.experimental.pallas import tpu as pltpu

IN_FEATURES = 28 * 28  # 784
# Default batch tile: 2048 * 784 * 4 B ~= 6.4 MiB per x buffer, x2 for
# double-buffering ~= 12.8 MiB -> fits default scoped VMEM on v5e/v6e/v7x.
DEFAULT_BLOCK_B = 2048


def _linear_kernel(x_ref, w_ref, b_ref, o_ref):
    # x_ref: (TB, 784), w_ref: (C, 784)  -- contract K=784 against K=784,
    # i.e. x @ w.T done directly on the MXU (no materialized transpose).
    acc = lax.dot_general(
        x_ref[...],
        w_ref[...],
        dimension_numbers=(((1,), (1,)), ((), ())),
        preferred_element_type=jnp.float32,
    )
    o_ref[...] = (acc + b_ref[...]).astype(o_ref.dtype)


def logistic_forward(x, weight, bias, *, block_b=DEFAULT_BLOCK_B):
    """Forward pass of the `logistic` module.

    Args:
      x:      any shape flattening to (B, 784), float32 (e.g. (B, 1, 28, 28)).
      weight: (nb_classes, 784)  -- PyTorch nn.Linear convention (NOT transposed).
      bias:   (nb_classes,)
    Returns:
      (B, nb_classes) float32 logits.
    """
    x2d = x.reshape(-1, IN_FEATURES)  # == torch x.view(-1, 28*28)
    B = x2d.shape[0]
    C = weight.shape[0]
    b2d = bias.reshape(1, C)

    # Pick the batch tile: for small B use a single full-array block
    # (block_shape == array shape is always legal); otherwise use large
    # aligned tiles and pad the batch to a tile multiple.
    if B <= block_b:
        tb = B
        padded_b = B
    else:
        tb = block_b
        padded_b = pl.cdiv(B, tb) * tb
        if padded_b != B:
            x2d = jnp.pad(x2d, ((0, padded_b - B), (0, 0)))

    grid = (padded_b // tb,)

    cost = pl.CostEstimate(
        flops=2 * padded_b * IN_FEATURES * C,
        transcendentals=0,
        bytes_accessed=(padded_b * IN_FEATURES * 4
                        + C * IN_FEATURES * 4
                        + padded_b * C * 4),
    )

    out = pl.pallas_call(
        _linear_kernel,
        out_shape=jax.ShapeDtypeStruct((padded_b, C), jnp.float32),
        grid=grid,
        in_specs=[
            # x: one batch tile per grid step (double-buffered by Pallas).
            pl.BlockSpec((tb, IN_FEATURES), lambda i: (i, 0)),
            # weight: constant block index -> DMA'd once, resident in VMEM.
            pl.BlockSpec((C, IN_FEATURES), lambda i: (0, 0)),
            # bias: constant block index -> resident in VMEM.
            pl.BlockSpec((1, C), lambda i: (0, 0)),
        ],
        out_specs=pl.BlockSpec((tb, C), lambda i: (i, 0)),
        compiler_params=pltpu.CompilerParams(
            dimension_semantics=("parallel",),
        ),
        cost_estimate=cost,
    )(x2d, weight, b2d)

    if padded_b != B:
        out = out[:B]
    return out


def init_logistic_params(key, nb_classes):
    """Deterministic init mimicking nn.Linear default (uniform +/- 1/sqrt(fan_in))."""
    k_w, k_b = jax.random.split(key)
    bound = 1.0 / (IN_FEATURES ** 0.5)
    weight = jax.random.uniform(
        k_w, (nb_classes, IN_FEATURES), jnp.float32, -bound, bound)
    bias = jax.random.uniform(
        k_b, (nb_classes,), jnp.float32, -bound, bound)
    return weight, bias


if __name__ == "__main__":
    nb_classes = 10
    batch = 2

    key = jax.random.PRNGKey(0)
    k_x, k_p = jax.random.split(key)

    # NCHW input, MNIST-style image batch.
    x = jax.random.normal(k_x, (batch, 1, 28, 28), jnp.float32)
    weight, bias = init_logistic_params(k_p, nb_classes)

    fwd = jax.jit(functools.partial(logistic_forward, block_b=DEFAULT_BLOCK_B))
    out = fwd(x, weight, bias)
    out = jax.block_until_ready(out)

    # Reference check against plain JAX (same math as the PyTorch forward).
    ref = x.reshape(-1, IN_FEATURES) @ weight.T + bias
    assert out.shape == (batch, nb_classes)
    assert jnp.allclose(out, ref, atol=1e-4, rtol=1e-4)

    print("KERNEL_OK")
</pallas_src>

<mosaic_0001>
module attributes {stable_mosaic.version = 11 : i64} {
  func.func @_linear_kernel(%arg0: i32, %arg1: memref<2x784xf32, #tpu.memory_space<vmem>>, %arg2: memref<10x784xf32, #tpu.memory_space<vmem>>, %arg3: memref<1x10xf32, #tpu.memory_space<vmem>>, %arg4: memref<2x10xf32, #tpu.memory_space<vmem>>) attributes {dimension_semantics = [#tpu.dimension_semantics<parallel>], iteration_bounds = array<i64: 1>, scalar_prefetch = 0 : i64, scratch_operands = 0 : i64, tpu.core_type = #tpu.core_type<tc>, window_params = [{transform_indices = @transform_0, window_bounds = array<i64: 2, 784>}, {pipeline_mode = #tpu.pipeline_mode<synchronous>, transform_indices = @transform_1, window_bounds = array<i64: 10, 784>}, {pipeline_mode = #tpu.pipeline_mode<synchronous>, transform_indices = @transform_2, window_bounds = array<i64: 1, 10>}, {transform_indices = @transform_3, window_bounds = array<i64: 2, 10>}]} {
    %c0 = arith.constant 0 : index
    %c0_0 = arith.constant 0 : index
    %0 = vector.load %arg1[%c0, %c0_0] : memref<2x784xf32, #tpu.memory_space<vmem>>, vector<2x784xf32>
    %c0_1 = arith.constant 0 : index
    %c0_2 = arith.constant 0 : index
    %1 = vector.load %arg2[%c0_1, %c0_2] : memref<10x784xf32, #tpu.memory_space<vmem>>, vector<10x784xf32>
    %cst = arith.constant dense<0.000000e+00> : vector<2x10xf32>
    %2 = tpu.matmul %0, %1, %cst {dimension_numbers = #tpu.dot_dimension_numbers<[1], [1], [0], [0], [0, 0, 1, 0], [], []>} : vector<2x784xf32>, vector<10x784xf32>, vector<2x10xf32> -> vector<2x10xf32>
    %c0_3 = arith.constant 0 : index
    %c0_4 = arith.constant 0 : index
    %3 = vector.load %arg3[%c0_3, %c0_4] : memref<1x10xf32, #tpu.memory_space<vmem>>, vector<1x10xf32>
    %4 = vector.broadcast %3 : vector<1x10xf32> to vector<2x10xf32>
    %5 = arith.addf %2, %4 : vector<2x10xf32>
    %c0_5 = arith.constant 0 : index
    %c0_6 = arith.constant 0 : index
    %6 = vector.load %arg4[%c0_5, %c0_6] : memref<2x10xf32, #tpu.memory_space<vmem>>, vector<2x10xf32>
    tpu.vector_store %arg4[%c0_5, %c0_6], %5 {strides = array<i32>} : memref<2x10xf32, #tpu.memory_space<vmem>>, vector<2x10xf32>,
    return
  }
  func.func @transform_0(%arg0: i32) -> (i32, i32) {
    %c0_i32 = arith.constant 0 : i32
    %c0_i32_0 = arith.constant 0 : i32
    return %arg0, %c0_i32 : i32, i32
  }
  func.func @transform_1(%arg0: i32) -> (i32, i32) {
    %c0_i32 = arith.constant 0 : i32
    %c0_i32_0 = arith.constant 0 : i32
    %c0_i32_1 = arith.constant 0 : i32
    return %c0_i32, %c0_i32_0 : i32, i32
  }
  func.func @transform_2(%arg0: i32) -> (i32, i32) {
    %c0_i32 = arith.constant 0 : i32
    %c0_i32_0 = arith.constant 0 : i32
    %c0_i32_1 = arith.constant 0 : i32
    return %c0_i32, %c0_i32_0 : i32, i32
  }
  func.func @transform_3(%arg0: i32) -> (i32, i32) {
    %c0_i32 = arith.constant 0 : i32
    %c0_i32_0 = arith.constant 0 : i32
    return %arg0, %c0_i32 : i32, i32
  }
}

</mosaic_0001>

<llo_original>
// kernel: logistic_forward.1
$region0: #{logistic_forward.1}
  #allocation0 [shape = 'u32[]', space=smem, size = 0x4, offset = 0x4, fixed_abs, tag = 'smem constant byte address 0x4 - core index']
  #allocation1 [shape = 'u32[72,128]{1,0:T(1,128)}', space=vmem, size = 0x9000, scoped, tag = 'internal scratch']
  %s0 = inlined_call_operand.vmem [shape: f32[2,784], index: 0, kind: input, shape index: {}]
  %s1 = inlined_call_operand.vmem [shape: f32[10,784], index: 1, kind: input, shape index: {}]
  %s2 = inlined_call_operand.vmem [shape: f32[1,10], index: 2, kind: input, shape index: {}]
  %s3 = inlined_call_operand.hbm [shape: f32[2,10], index: 3, kind: output, shape index: {}]
  %s4 = sld [smem:[#allocation0]]
  $region22: #{logistic_forward.1} parent=0
    _
  %s6 = ssub.s32 1, %s4
  %s7 = scalar_select 0, %s6, %s4
  $region1: #{logistic_forward.1} parent=0
    #allocation2 [shape = 'u8[1024]{0}', space=vmem, size = 0x400, scoped, tag = 'output window, operand 0, single buffered']
    #allocation3 [shape = 's32[1]{0}', space=sflag, size = 0x4, scoped, tag = 'scoped memory for logistic_forward.1']
    %8 = vsyncpa [#allocation3], 0
    // Predicated region
    $region2: #{logistic_forward.1} parent=1 // pred_check
      _
    $region3: #{logistic_forward.1} parent=1 // pred_check_branch
      %10 = sbr.rel (0) target = $region5
    $region4: #{logistic_forward.1} parent=1 // pred_region
      _
    $region5: #{logistic_forward.1} parent=1 // pred_fallthru
      _
    // Predicated region
    $region6: #{logistic_forward.1} parent=1 // pred_check
      _
    $region7: #{logistic_forward.1} parent=1 // pred_check_branch
      %12 = sbr.rel (0) target = $region9
    $region8: #{logistic_forward.1} parent=1 // pred_region
      _
    $region9: #{logistic_forward.1} parent=1 // pred_fallthru
      _
    // Predicated region
    $region10: #{logistic_forward.1} parent=1 // pred_check
      _
    $region11: #{logistic_forward.1} parent=1 // pred_check_branch
      %14 = sbr.rel (0) target = $region13
    $region12: #{logistic_forward.1} parent=1 // pred_region
      _
    $region13: #{logistic_forward.1} parent=1 // pred_fallthru
      _
    %v15 = vld [vmem:[%s0] sm:$0xff]
    %v16 = vld [vmem:[%s0 + $0x8] sm:$0x3f]
    %v17 = vld [vmem:[%s1] sm:$0xff]
    %v18 = vld [vmem:[%s1 + $0x8] sm:$0xff]
    %v19 = vld [vmem:[%s1 + $0x10] sm:$0xff]
    %v20 = vld [vmem:[%s1 + $0x18] sm:$0xff]
    %v21 = vld [vmem:[%s1 + $0x20] sm:$0xff]
    %v22 = vld [vmem:[%s1 + $0x28] sm:$0xff]
    %v23 = vld [vmem:[%s1 + $0x30] sm:$0xff]
    %v24 = vld [vmem:[%s1 + $0x38] sm:$0x3]
    %v25 = vld [vmem:[%s1 + $0x40] sm:$0x3]
    %v26 = vld [vmem:[%s1 + $0x48] sm:$0x3]
    %v27 = vld [vmem:[%s1 + $0x50] sm:$0x3]
    %v28 = vld [vmem:[%s1 + $0x58] sm:$0x3]
    %v29 = vld [vmem:[%s1 + $0x60] sm:$0x3]
    %v30 = vld [vmem:[%s1 + $0x68] sm:$0x3]
    %v31 = vld [vmem:[%s2] sm:$0x1]
    %v33 = vperm.slane %v31, 0
    %37 = vst [vmem:[#allocation1] ss:$4 sm:$0xff] %v15
    %s38 = scalar_lea.vmem [#allocation1], 32
    %39 = vst [vmem:[%s38] ss:$4 sm:$0xff] %v16
    %v40 = vld.sshfl [vmem:[#allocation1] sm:$0xff pattern:$0x73625140]
    %v41 = vld.sshfl [vmem:[#allocation1 + $0x8] sm:$0xff pattern:$0x73625140]
    %v42 = vld.sshfl [vmem:[#allocation1 + $0x10] sm:$0xff pattern:$0x73625140]
    %v43 = vld.sshfl [vmem:[#allocation1 + $0x18] sm:$0xff pattern:$0x73625140]
    %v44 = vld.sshfl [vmem:[#allocation1 + $0x20] sm:$0xff pattern:$0x73625140]
    %v45 = vld.sshfl [vmem:[#allocation1 + $0x28] sm:$0xff pattern:$0x73625140]
    %v46 = vld.sshfl [vmem:[#allocation1 + $0x30] sm:$0xff pattern:$0x73625140]
    %vm53 = vcmask 130048
    %v54 = vsel %vm53, %v46, 0
    %v57 = vsel %vm53, %v23, 0
    %v60 = vsel %vm53, %v30, 0
    %62 = vmatpush.xpose.msra.mxu0 0.0
    %63 = vmatpush.xpose.msra.mxu0 0.0
    %64 = vmatpush.xpose.msra.mxu0 0.0
    %65 = vmatpush.xpose.msra.mxu0 0.0
    %66 = vmatpush.xpose.msra.mxu0 0.0
    %67 = vmatpush.xpose.msra.mxu0 0.0
    %68 = vmatpush.xpose.msra.mxu0 0.0
    %69 = vmatpush.xpose.msra.mxu0 0.0
    %70 = vmatpush.xpose.msra.mxu0 0.0
    %71 = vmatpush.xpose.msra.mxu0 0.0
    %72 = vmatpush.xpose.msra.mxu0 0.0
    %73 = vmatpush.xpose.msra.mxu0 0.0
    %74 = vmatpush.xpose.msra.mxu0 0.0
    %75 = vmatpush.xpose.msra.mxu0 0.0
    %76 = vmatpush.xpose.msra.mxu0 %v24
    %77 = vmatpush.xpose.msra.mxu0 %v17
    %78 = vmatmul.f32.gmra.mxu0 %v40
    %v79 = vpop.f32.mrf.mxu0
    %v80 = vadd.f32 %v33, %v79
    %81 = vdwg.mxu0
    %82 = vmatpush.xpose.msra.mxu0 0.0
    %83 = vmatpush.xpose.msra.mxu0 0.0
    %84 = vmatpush.xpose.msra.mxu0 0.0
    %85 = vmatpush.xpose.msra.mxu0 0.0
    %86 = vmatpush.xpose.msra.mxu0 0.0
    %87 = vmatpush.xpose.msra.mxu0 0.0
    %88 = vmatpush.xpose.msra.mxu0 0.0
    %89 = vmatpush.xpose.msra.mxu0 0.0
    %90 = vmatpush.xpose.msra.mxu0 0.0
    %91 = vmatpush.xpose.msra.mxu0 0.0
    %92 = vmatpush.xpose.msra.mxu0 0.0
    %93 = vmatpush.xpose.msra.mxu0 0.0
    %94 = vmatpush.xpose.msra.mxu0 0.0
    %95 = vmatpush.xpose.msra.mxu0 0.0
    %96 = vmatpush.xpose.msra.mxu0 %v25
    %97 = vmatpush.xpose.msra.mxu0 %v18
    %98 = vmatmul.f32.gmra.mxu0 %v41
    %v99 = vpop.f32.mrf.mxu0
    %v100 = vadd.f32 %v80, %v99
    %101 = vdwg.mxu0
    %102 = vmatpush.xpose.msra.mxu0 0.0
    %103 = vmatpush.xpose.msra.mxu0 0.0
    %104 = vmatpush.xpose.msra.mxu0 0.0
    %105 = vmatpush.xpose.msra.mxu0 0.0
    %106 = vmatpush.xpose.msra.mxu0 0.0
    %107 = vmatpush.xpose.msra.mxu0 0.0
    %108 = vmatpush.xpose.msra.mxu0 0.0
    %109 = vmatpush.xpose.msra.mxu0 0.0
    %110 = vmatpush.xpose.msra.mxu0 0.0
    %111 = vmatpush.xpose.msra.mxu0 0.0
    %112 = vmatpush.xpose.msra.mxu0 0.0
    %113 = vmatpush.xpose.msra.mxu0 0.0
    %114 = vmatpush.xpose.msra.mxu0 0.0
    %115 = vmatpush.xpose.msra.mxu0 0.0
    %116 = vmatpush.xpose.msra.mxu0 %v26
    %117 = vmatpush.xpose.msra.mxu0 %v19
    %118 = vmatmul.f32.gmra.mxu0 %v42
    %v119 = vpop.f32.mrf.mxu0
    %v120 = vadd.f32 %v100, %v119
    %121 = vdwg.mxu0
    %122 = vmatpush.xpose.msra.mxu0 0.0
    %123 = vmatpush.xpose.msra.mxu0 0.0
    %124 = vmatpush.xpose.msra.mxu0 0.0
    %125 = vmatpush.xpose.msra.mxu0 0.0
    %126 = vmatpush.xpose.msra.mxu0 0.0
    %127 = vmatpush.xpose.msra.mxu0 0.0
    %128 = vmatpush.xpose.msra.mxu0 0.0
    %129 = vmatpush.xpose.msra.mxu0 0.0
    %130 = vmatpush.xpose.msra.mxu0 0.0
    %131 = vmatpush.xpose.msra.mxu0 0.0
    %132 = vmatpush.xpose.msra.mxu0 0.0
    %133 = vmatpush.xpose.msra.mxu0 0.0
    %134 = vmatpush.xpose.msra.mxu0 0.0
    %135 = vmatpush.xpose.msra.mxu0 0.0
    %136 = vmatpush.xpose.msra.mxu0 %v27
    %137 = vmatpush.xpose.msra.mxu0 %v20
    %138 = vmatmul.f32.gmra.mxu0 %v43
    %v139 = vpop.f32.mrf.mxu0
    %v140 = vadd.f32 %v120, %v139
    %141 = vdwg.mxu0
    %142 = vmatpush.xpose.msra.mxu0 0.0
    %143 = vmatpush.xpose.msra.mxu0 0.0
    %144 = vmatpush.xpose.msra.mxu0 0.0
    %145 = vmatpush.xpose.msra.mxu0 0.0
    %146 = vmatpush.xpose.msra.mxu0 0.0
    %147 = vmatpush.xpose.msra.mxu0 0.0
    %148 = vmatpush.xpose.msra.mxu0 0.0
    %149 = vmatpush.xpose.msra.mxu0 0.0
    %150 = vmatpush.xpose.msra.mxu0 0.0
    %151 = vmatpush.xpose.msra.mxu0 0.0
    %152 = vmatpush.xpose.msra.mxu0 0.0
    %153 = vmatpush.xpose.msra.mxu0 0.0
    %154 = vmatpush.xpose.msra.mxu0 0.0
    %155 = vmatpush.xpose.msra.mxu0 0.0
    %156 = vmatpush.xpose.msra.mxu0 %v28
    %157 = vmatpush.xpose.msra.mxu0 %v21
    %158 = vmatmul.f32.gmra.mxu0 %v44
    %v159 = vpop.f32.mrf.mxu0
    %v160 = vadd.f32 %v140, %v159
    %161 = vdwg.mxu0
    %162 = vmatpush.xpose.msra.mxu0 0.0
    %163 = vmatpush.xpose.msra.mxu0 0.0
    %164 = vmatpush.xpose.msra.mxu0 0.0
    %165 = vmatpush.xpose.msra.mxu0 0.0
    %166 = vmatpush.xpose.msra.mxu0 0.0
    %167 = vmatpush.xpose.msra.mxu0 0.0
    %168 = vmatpush.xpose.msra.mxu0 0.0
    %169 = vmatpush.xpose.msra.mxu0 0.0
    %170 = vmatpush.xpose.msra.mxu0 0.0
    %171 = vmatpush.xpose.msra.mxu0 0.0
    %172 = vmatpush.xpose.msra.mxu0 0.0
    %173 = vmatpush.xpose.msra.mxu0 0.0
    %174 = vmatpush.xpose.msra.mxu0 0.0
    %175 = vmatpush.xpose.msra.mxu0 0.0
    %176 = vmatpush.xpose.msra.mxu0 %v29
    %177 = vmatpush.xpose.msra.mxu0 %v22
    %178 = vmatmul.f32.gmra.mxu0 %v45
    %v179 = vpop.f32.mrf.mxu0
    %v180 = vadd.f32 %v160, %v179
    %181 = vdwg.mxu0
    %182 = vmatpush.xpose.msra.mxu0 0.0
    %183 = vmatpush.xpose.msra.mxu0 0.0
    %184 = vmatpush.xpose.msra.mxu0 0.0
    %185 = vmatpush.xpose.msra.mxu0 0.0
    %186 = vmatpush.xpose.msra.mxu0 0.0
    %187 = vmatpush.xpose.msra.mxu0 0.0
    %188 = vmatpush.xpose.msra.mxu0 0.0
    %189 = vmatpush.xpose.msra.mxu0 0.0
    %190 = vmatpush.xpose.msra.mxu0 0.0
    %191 = vmatpush.xpose.msra.mxu0 0.0
    %192 = vmatpush.xpose.msra.mxu0 0.0
    %193 = vmatpush.xpose.msra.mxu0 0.0
    %194 = vmatpush.xpose.msra.mxu0 0.0
    %195 = vmatpush.xpose.msra.mxu0 0.0
    %196 = vmatpush.xpose.msra.mxu0 %v60
    %197 = vmatpush.xpose.msra.mxu0 %v57
    %198 = vmatmul.f32.gmra.mxu0 %v54
    %v199 = vpop.f32.mrf.mxu0
    %v200 = vadd.f32 %v180, %v199
    %201 = vdwg.mxu0
    %vm202 = vcmask 74752
    %203 = vst.msk [vmem:[#allocation2] sm:$0x3] %vm202, %v200
    // Predicated region
    $region14: #{logistic_forward.1} parent=1 // pred_check
      _
    $region15: #{logistic_forward.1} parent=1 // pred_check_branch
      %205 = sbr.rel (0) target = $region17
    $region16: #{logistic_forward.1} parent=1 // pred_region
      %207 = vsyncadd [#allocation3], 0
      %s209 = sshll.u32 [#allocation2], 4
      %s210 = int_to_ptr.vmem [resolvable:$true] %s209
      %s211 = sshll.u32 %s3, 4
      %s212 = int_to_ptr.hbm [resolvable:$true] %s211
      %214 = dma.vmem_to_hbm [thread:$0]  %s210, 32, %s212, [#allocation3]
    $region17: #{logistic_forward.1} parent=1 // pred_fallthru
      _
    // Predicated region
    $region18: #{logistic_forward.1} parent=1 // pred_check
      _
    $region19: #{logistic_forward.1} parent=1 // pred_check_branch
      %216 = sbr.rel (0) target = $region21
    $region20: #{logistic_forward.1} parent=1 // pred_region
      %218 = dma.done [#allocation3], 32
    $region21: #{logistic_forward.1} parent=1 // pred_fallthru
      _
    %219 = vsyncpa [#allocation3], 1

</llo_original>
